<compile_context>
chip_gen: v7x
topology: tpu7x:2x2x1
jax: 0.10.0
libtpu: 0.0.40
codegen_flags: <defaults>
</compile_context>

<pallas_src>
import functools

import jax
import jax.numpy as jnp
from jax.experimental import pallas as pl
from jax.experimental.pallas import tpu as pltpu
import numpy as np


# ----------------------------- fused kernel ---------------------------------
def _double_conv_kernel(xin_ref, dwv1_ref, p1_ref, b1_ref, dwv2_ref, p2_ref,
                        b2_ref, out_ref, ypad_ref, *, H, W, C1, C2):
    """One batch element: DoubleConv on lane-packed (H, W*C) slabs.

    xin_ref : (1, H+2, W*C1)  input with 1-row halo (rows 0 and H+1 are zero)
    dwv*_ref: (9, W*C)        depthwise tap weights, W-boundary zeros baked in
    p*_ref  : (W*Cin, W*Cout) block-diagonal pointwise weights (BN scale folded)
    b*_ref  : (1, W*Cout)     BN bias, per-channel, tiled over W
    ypad_ref: (H+2, W*C2)     VMEM scratch for the block-2 halo'd intermediate
    """
    WC1 = W * C1
    WC2 = W * C2

    def dw3x3(xp, dwv, C, WC):
        # xp: (H+2, WC) with zero halo rows; dwv: (9, WC)
        acc = jnp.zeros((H, WC), jnp.float32)
        for kh in range(3):
            xh = xp[kh:kh + H, :]                       # static sublane slice
            for kw, dwo in enumerate((-1, 0, 1)):
                if dwo == 0:
                    xs = xh
                else:
                    # lane shift by +-C channels; wrapped lanes are killed by
                    # the zeros baked into dwv at the W boundary.
                    xs = pltpu.roll(xh, shift=(-dwo * C) % WC, axis=1)
                t = kh * 3 + kw
                acc = acc + xs * dwv[t:t + 1, :]
        return acc

    # ---- block 1: depthwise 3x3 -> (pointwise . BN-scale) matmul -> +bias -> ReLU
    acc1 = dw3x3(xin_ref[0], dwv1_ref[...], C1, WC1)
    y1 = jnp.dot(acc1, p1_ref[...], preferred_element_type=jnp.float32) + b1_ref[...]
    y1 = jnp.maximum(y1, 0.0)

    # ---- block 2: same, intermediate kept in VMEM (halo rows zeroed in-kernel)
    ypad_ref[...] = jnp.zeros((H + 2, WC2), jnp.float32)
    ypad_ref[pl.ds(1, H), :] = y1
    acc2 = dw3x3(ypad_ref[...], dwv2_ref[...], C2, WC2)
    y2 = jnp.dot(acc2, p2_ref[...], preferred_element_type=jnp.float32) + b2_ref[...]
    out_ref[0] = jnp.maximum(y2, 0.0)


# --------------------------- parameter packing ------------------------------
def _pack_dw(dw, W):
    """(3,3,C) per-channel taps -> (9, W*C) lane vectors; W-boundary taps zeroed."""
    C = dw.shape[-1]
    base = jnp.broadcast_to(dw[:, :, None, :], (3, 3, W, C))
    w_idx = jnp.arange(W)
    wmask = jnp.stack([w_idx >= 1,                       # kw=0 reads w-1
                       jnp.ones((W,), dtype=bool),       # kw=1 reads w
                       w_idx <= W - 2], axis=0)          # kw=2 reads w+1
    base = base * wmask[None, :, :, None].astype(dw.dtype)
    return base.reshape(9, W * C)


def _pack_pw(pw, scale, W):
    """Pointwise (Cin,Cout) with folded BN scale -> block-diagonal (W*Cin, W*Cout)."""
    return jnp.kron(jnp.eye(W, dtype=pw.dtype), pw * scale[None, :])


def _pack_bias(bias, W):
    return jnp.tile(bias, W).reshape(1, -1)


# ------------------------------- forward ------------------------------------
def up_forward(params, x1_nchw, x2_nchw):
    """Up.forward: pad x1 -> fuse with x2 -> DoubleConv.  NCHW in / NCHW out."""
    B = x2_nchw.shape[0]
    H, W = x2_nchw.shape[2], x2_nchw.shape[3]
    diffY = H - x1_nchw.shape[2]
    diffX = W - x1_nchw.shape[3]

    # Layout prologue (single fused XLA chain): NCHW->NHWC, F.pad(x1), channel
    # concat [x2, x1], 1-row conv halo, pack (W, C) onto the 128-lane axis.
    x1 = jnp.transpose(x1_nchw, (0, 2, 3, 1))
    x2 = jnp.transpose(x2_nchw, (0, 2, 3, 1))
    x1 = jnp.pad(x1, ((0, 0),
                      (diffY // 2, diffY - diffY // 2),
                      (diffX // 2, diffX - diffX // 2),
                      (0, 0)))
    # TODO(synk): EFF fusion module source not provided; using concat [x2, x1].
    x = jnp.concatenate([x2, x1], axis=-1)                      # (B, H, W, Cin)
    Cin = x.shape[-1]
    x = jnp.pad(x, ((0, 0), (1, 1), (0, 0), (0, 0)))            # H halo rows
    x = x.reshape(B, H + 2, W * Cin)                            # lane-dense slab

    Cout = params["pw1"].shape[1]
    WC1, WC2 = W * Cin, W * Cout

    dwv1 = _pack_dw(params["dw1"], W)
    dwv2 = _pack_dw(params["dw2"], W)
    p1 = _pack_pw(params["pw1"], params["scale1"], W)
    p2 = _pack_pw(params["pw2"], params["scale2"], W)
    b1 = _pack_bias(params["bias1"], W)
    b2 = _pack_bias(params["bias2"], W)

    kernel = functools.partial(_double_conv_kernel, H=H, W=W, C1=Cin, C2=Cout)

    y = pl.pallas_call(
        kernel,
        out_shape=jax.ShapeDtypeStruct((B, H, WC2), jnp.float32),
        grid_spec=pltpu.PrefetchScalarGridSpec(
            num_scalar_prefetch=0,
            grid=(B,),
            in_specs=[
                pl.BlockSpec((1, H + 2, WC1), lambda b: (b, 0, 0)),
                pl.BlockSpec((9, WC1), lambda b: (0, 0)),
                pl.BlockSpec((WC1, WC2), lambda b: (0, 0)),
                pl.BlockSpec((1, WC2), lambda b: (0, 0)),
                pl.BlockSpec((9, WC2), lambda b: (0, 0)),
                pl.BlockSpec((WC2, WC2), lambda b: (0, 0)),
                pl.BlockSpec((1, WC2), lambda b: (0, 0)),
            ],
            out_specs=pl.BlockSpec((1, H, WC2), lambda b: (b, 0, 0)),
            scratch_shapes=[pltpu.VMEM((H + 2, WC2), jnp.float32)],
        ),
        compiler_params=pltpu.CompilerParams(dimension_semantics=("parallel",)),
    )(x, dwv1, p1, b1, dwv2, p2, b2)

    return jnp.transpose(y.reshape(B, H, W, Cout), (0, 3, 1, 2))


# --------------------------- synthetic parameters ----------------------------
def init_up_params(in_channels, out_channels, key):
    """Deterministic synthetic parameters for DoubleConv(in_channels, out_channels)."""
    k = jax.random.split(key, 4)
    eps = 1e-5
    p = {}
    # block 1: DepthWiseConv2d(in, out, k=3, p=1), bias=False
    p["dw1"] = 0.1 * jax.random.normal(k[0], (3, 3, in_channels), jnp.float32)
    p["pw1"] = 0.1 * jax.random.normal(k[1], (in_channels, out_channels), jnp.float32)
    # BatchNorm2d(out) in eval mode with default stats/affine, folded to scale/bias.
    p["scale1"] = jnp.ones((out_channels,), jnp.float32) / jnp.sqrt(1.0 + eps)
    p["bias1"] = jnp.zeros((out_channels,), jnp.float32)
    # block 2: DepthWiseConv2d(out, out, k=3, p=1), bias=False
    p["dw2"] = 0.1 * jax.random.normal(k[2], (3, 3, out_channels), jnp.float32)
    p["pw2"] = 0.1 * jax.random.normal(k[3], (out_channels, out_channels), jnp.float32)
    p["scale2"] = jnp.ones((out_channels,), jnp.float32) / jnp.sqrt(1.0 + eps)
    p["bias2"] = jnp.zeros((out_channels,), jnp.float32)
    return p


# ---------------- pure-JAX reference (for correctness check) -----------------
def _ref_block(x_nhwc, dw, pw, scale, bias):
    C = x_nhwc.shape[-1]
    dwk = dw.reshape(3, 3, 1, C)                       # HWIO, depthwise
    y = jax.lax.conv_general_dilated(
        x_nhwc, dwk, window_strides=(1, 1), padding=((1, 1), (1, 1)),
        dimension_numbers=("NHWC", "HWIO", "NHWC"), feature_group_count=C)
    y = jnp.einsum("bhwc,cd->bhwd", y, pw)
    y = y * scale + bias
    return jnp.maximum(y, 0.0)


def up_forward_ref(params, x1_nchw, x2_nchw):
    diffY = x2_nchw.shape[2] - x1_nchw.shape[2]
    diffX = x2_nchw.shape[3] - x1_nchw.shape[3]
    x1p = jnp.pad(
        x1_nchw,
        ((0, 0), (0, 0),
         (diffY // 2, diffY - diffY // 2),
         (diffX // 2, diffX - diffX // 2)),
    )
    x = jnp.concatenate([x2_nchw, x1p], axis=1)
    x = jnp.transpose(x, (0, 2, 3, 1))
    y = _ref_block(x, params["dw1"], params["pw1"], params["scale1"], params["bias1"])
    y = _ref_block(y, params["dw2"], params["pw2"], params["scale2"], params["bias2"])
    return jnp.transpose(y, (0, 3, 1, 2))


if __name__ == "__main__":
    key = jax.random.PRNGKey(0)
    kx1, kx2, kp = jax.random.split(key, 3)

    in_channels, out_channels = 8, 8
    B, H, W = 2, 16, 16
    # x1 is smaller spatially so the F.pad path is exercised
    x1 = jax.random.normal(kx1, (B, in_channels // 2, H - 2, W - 2), jnp.float32)
    x2 = jax.random.normal(kx2, (B, in_channels // 2, H, W), jnp.float32)

    params = init_up_params(in_channels, out_channels, kp)

    up_jit = jax.jit(up_forward)
    out = jax.block_until_ready(up_jit(params, x1, x2))

    ref = jax.block_until_ready(up_forward_ref(params, x1, x2))
    np.testing.assert_allclose(np.asarray(out), np.asarray(ref), rtol=1e-4, atol=1e-5)

    assert out.shape == (B, out_channels, H, W)
    print("KERNEL_OK")
</pallas_src>

<mosaic_0001>
module attributes {stable_mosaic.version = 11 : i64} {
  func.func @_double_conv_kernel(%arg0: i32, %arg1: memref<1x18x128xf32, #tpu.memory_space<vmem>>, %arg2: memref<9x128xf32, #tpu.memory_space<vmem>>, %arg3: memref<128x128xf32, #tpu.memory_space<vmem>>, %arg4: memref<1x128xf32, #tpu.memory_space<vmem>>, %arg5: memref<9x128xf32, #tpu.memory_space<vmem>>, %arg6: memref<128x128xf32, #tpu.memory_space<vmem>>, %arg7: memref<1x128xf32, #tpu.memory_space<vmem>>, %arg8: memref<1x16x128xf32, #tpu.memory_space<vmem>>, %arg9: memref<18x128xf32, #tpu.memory_space<vmem>>) attributes {dimension_semantics = [#tpu.dimension_semantics<parallel>], iteration_bounds = array<i64: 2>, scalar_prefetch = 0 : i64, scratch_operands = 1 : i64, tpu.core_type = #tpu.core_type<tc>, window_params = [{transform_indices = @transform_0, window_bounds = array<i64: 1, 18, 128>}, {pipeline_mode = #tpu.pipeline_mode<synchronous>, transform_indices = @transform_1, window_bounds = array<i64: 9, 128>}, {pipeline_mode = #tpu.pipeline_mode<synchronous>, transform_indices = @transform_2, window_bounds = array<i64: 128, 128>}, {pipeline_mode = #tpu.pipeline_mode<synchronous>, transform_indices = @transform_3, window_bounds = array<i64: 1, 128>}, {pipeline_mode = #tpu.pipeline_mode<synchronous>, transform_indices = @transform_4, window_bounds = array<i64: 9, 128>}, {pipeline_mode = #tpu.pipeline_mode<synchronous>, transform_indices = @transform_5, window_bounds = array<i64: 128, 128>}, {pipeline_mode = #tpu.pipeline_mode<synchronous>, transform_indices = @transform_6, window_bounds = array<i64: 1, 128>}, {transform_indices = @transform_7, window_bounds = array<i64: 1, 16, 128>}]} {
    %c0 = arith.constant 0 : index
    %c0_0 = arith.constant 0 : index
    %c0_1 = arith.constant 0 : index
    %0 = vector.load %arg1[%c0, %c0_0, %c0_1] : memref<1x18x128xf32, #tpu.memory_space<vmem>>, vector<1x18x128xf32>
    %1 = vector.shape_cast %0 : vector<1x18x128xf32> to vector<18x128xf32>
    %c0_2 = arith.constant 0 : index
    %c0_3 = arith.constant 0 : index
    %2 = vector.load %arg2[%c0_2, %c0_3] : memref<9x128xf32, #tpu.memory_space<vmem>>, vector<9x128xf32>
    %cst = arith.constant 0.000000e+00 : f32
    %3 = vector.broadcast %cst : f32 to vector<16x128xf32>
    %4 = vector.extract_strided_slice %1 {offsets = [0, 0], sizes = [16, 128], strides = [1, 1]} : vector<18x128xf32> to vector<16x128xf32>
    %c8_i32 = arith.constant 8 : i32
    %5 = tpu.dynamic_rotate %4 by %c8_i32 dim 1 : vector<16x128xf32>, i32 -> vector<16x128xf32>
    %6 = vector.extract_strided_slice %2 {offsets = [0, 0], sizes = [1, 128], strides = [1, 1]} : vector<9x128xf32> to vector<1x128xf32>
    %7 = vector.broadcast %6 : vector<1x128xf32> to vector<16x128xf32>
    %8 = arith.mulf %5, %7 : vector<16x128xf32>
    %9 = arith.addf %3, %8 : vector<16x128xf32>
    %10 = vector.extract_strided_slice %2 {offsets = [1, 0], sizes = [1, 128], strides = [1, 1]} : vector<9x128xf32> to vector<1x128xf32>
    %11 = vector.broadcast %10 : vector<1x128xf32> to vector<16x128xf32>
    %12 = arith.mulf %4, %11 : vector<16x128xf32>
    %13 = arith.addf %9, %12 : vector<16x128xf32>
    %c120_i32 = arith.constant 120 : i32
    %14 = tpu.dynamic_rotate %4 by %c120_i32 dim 1 : vector<16x128xf32>, i32 -> vector<16x128xf32>
    %15 = vector.extract_strided_slice %2 {offsets = [2, 0], sizes = [1, 128], strides = [1, 1]} : vector<9x128xf32> to vector<1x128xf32>
    %16 = vector.broadcast %15 : vector<1x128xf32> to vector<16x128xf32>
    %17 = arith.mulf %14, %16 : vector<16x128xf32>
    %18 = arith.addf %13, %17 : vector<16x128xf32>
    %19 = vector.extract_strided_slice %1 {offsets = [1, 0], sizes = [16, 128], strides = [1, 1]} : vector<18x128xf32> to vector<16x128xf32>
    %c8_i32_4 = arith.constant 8 : i32
    %20 = tpu.dynamic_rotate %19 by %c8_i32_4 dim 1 : vector<16x128xf32>, i32 -> vector<16x128xf32>
    %21 = vector.extract_strided_slice %2 {offsets = [3, 0], sizes = [1, 128], strides = [1, 1]} : vector<9x128xf32> to vector<1x128xf32>
    %22 = vector.broadcast %21 : vector<1x128xf32> to vector<16x128xf32>
    %23 = arith.mulf %20, %22 : vector<16x128xf32>
    %24 = arith.addf %18, %23 : vector<16x128xf32>
    %25 = vector.extract_strided_slice %2 {offsets = [4, 0], sizes = [1, 128], strides = [1, 1]} : vector<9x128xf32> to vector<1x128xf32>
    %26 = vector.broadcast %25 : vector<1x128xf32> to vector<16x128xf32>
    %27 = arith.mulf %19, %26 : vector<16x128xf32>
    %28 = arith.addf %24, %27 : vector<16x128xf32>
    %c120_i32_5 = arith.constant 120 : i32
    %29 = tpu.dynamic_rotate %19 by %c120_i32_5 dim 1 : vector<16x128xf32>, i32 -> vector<16x128xf32>
    %30 = vector.extract_strided_slice %2 {offsets = [5, 0], sizes = [1, 128], strides = [1, 1]} : vector<9x128xf32> to vector<1x128xf32>
    %31 = vector.broadcast %30 : vector<1x128xf32> to vector<16x128xf32>
    %32 = arith.mulf %29, %31 : vector<16x128xf32>
    %33 = arith.addf %28, %32 : vector<16x128xf32>
    %34 = vector.extract_strided_slice %1 {offsets = [2, 0], sizes = [16, 128], strides = [1, 1]} : vector<18x128xf32> to vector<16x128xf32>
    %c8_i32_6 = arith.constant 8 : i32
    %35 = tpu.dynamic_rotate %34 by %c8_i32_6 dim 1 : vector<16x128xf32>, i32 -> vector<16x128xf32>
    %36 = vector.extract_strided_slice %2 {offsets = [6, 0], sizes = [1, 128], strides = [1, 1]} : vector<9x128xf32> to vector<1x128xf32>
    %37 = vector.broadcast %36 : vector<1x128xf32> to vector<16x128xf32>
    %38 = arith.mulf %35, %37 : vector<16x128xf32>
    %39 = arith.addf %33, %38 : vector<16x128xf32>
    %40 = vector.extract_strided_slice %2 {offsets = [7, 0], sizes = [1, 128], strides = [1, 1]} : vector<9x128xf32> to vector<1x128xf32>
    %41 = vector.broadcast %40 : vector<1x128xf32> to vector<16x128xf32>
    %42 = arith.mulf %34, %41 : vector<16x128xf32>
    %43 = arith.addf %39, %42 : vector<16x128xf32>
    %c120_i32_7 = arith.constant 120 : i32
    %44 = tpu.dynamic_rotate %34 by %c120_i32_7 dim 1 : vector<16x128xf32>, i32 -> vector<16x128xf32>
    %45 = vector.extract_strided_slice %2 {offsets = [8, 0], sizes = [1, 128], strides = [1, 1]} : vector<9x128xf32> to vector<1x128xf32>
    %46 = vector.broadcast %45 : vector<1x128xf32> to vector<16x128xf32>
    %47 = arith.mulf %44, %46 : vector<16x128xf32>
    %48 = arith.addf %43, %47 : vector<16x128xf32>
    %c0_8 = arith.constant 0 : index
    %c0_9 = arith.constant 0 : index
    %49 = vector.load %arg3[%c0_8, %c0_9] : memref<128x128xf32, #tpu.memory_space<vmem>>, vector<128x128xf32>
    %cst_10 = arith.constant dense<0.000000e+00> : vector<16x128xf32>
    %50 = tpu.matmul %48, %49, %cst_10 {dimension_numbers = #tpu.dot_dimension_numbers<[1], [0], [0], [1], [0, 0, 1, 1], [], []>} : vector<16x128xf32>, vector<128x128xf32>, vector<16x128xf32> -> vector<16x128xf32>
    %c0_11 = arith.constant 0 : index
    %c0_12 = arith.constant 0 : index
    %51 = vector.load %arg4[%c0_11, %c0_12] : memref<1x128xf32, #tpu.memory_space<vmem>>, vector<1x128xf32>
    %52 = vector.broadcast %51 : vector<1x128xf32> to vector<16x128xf32>
    %53 = arith.addf %50, %52 : vector<16x128xf32>
    %cst_13 = arith.constant 0.000000e+00 : f32
    %54 = vector.broadcast %cst_13 : f32 to vector<16x128xf32>
    %55 = arith.maximumf %53, %54 : vector<16x128xf32>
    %cst_14 = arith.constant 0.000000e+00 : f32
    %56 = vector.broadcast %cst_14 : f32 to vector<18x128xf32>
    %c0_15 = arith.constant 0 : index
    %c0_16 = arith.constant 0 : index
    %57 = vector.load %arg9[%c0_15, %c0_16] : memref<18x128xf32, #tpu.memory_space<vmem>>, vector<18x128xf32>
    tpu.vector_store %arg9[%c0_15, %c0_16], %56 {strides = array<i32>} : memref<18x128xf32, #tpu.memory_space<vmem>>, vector<18x128xf32>,
    %c1 = arith.constant 1 : index
    %c0_17 = arith.constant 0 : index
    %58 = vector.load %arg9[%c1, %c0_17] : memref<18x128xf32, #tpu.memory_space<vmem>>, vector<16x128xf32>
    tpu.vector_store %arg9[%c1, %c0_17], %55 {strides = array<i32>} : memref<18x128xf32, #tpu.memory_space<vmem>>, vector<16x128xf32>,
    %c0_18 = arith.constant 0 : index
    %c0_19 = arith.constant 0 : index
    %59 = vector.load %arg9[%c0_18, %c0_19] : memref<18x128xf32, #tpu.memory_space<vmem>>, vector<18x128xf32>
    %c0_20 = arith.constant 0 : index
    %c0_21 = arith.constant 0 : index
    %60 = vector.load %arg5[%c0_20, %c0_21] : memref<9x128xf32, #tpu.memory_space<vmem>>, vector<9x128xf32>
    %cst_22 = arith.constant 0.000000e+00 : f32
    %61 = vector.broadcast %cst_22 : f32 to vector<16x128xf32>
    %62 = vector.extract_strided_slice %59 {offsets = [0, 0], sizes = [16, 128], strides = [1, 1]} : vector<18x128xf32> to vector<16x128xf32>
    %c8_i32_23 = arith.constant 8 : i32
    %63 = tpu.dynamic_rotate %62 by %c8_i32_23 dim 1 : vector<16x128xf32>, i32 -> vector<16x128xf32>
    %64 = vector.extract_strided_slice %60 {offsets = [0, 0], sizes = [1, 128], strides = [1, 1]} : vector<9x128xf32> to vector<1x128xf32>
    %65 = vector.broadcast %64 : vector<1x128xf32> to vector<16x128xf32>
    %66 = arith.mulf %63, %65 : vector<16x128xf32>
    %67 = arith.addf %61, %66 : vector<16x128xf32>
    %68 = vector.extract_strided_slice %60 {offsets = [1, 0], sizes = [1, 128], strides = [1, 1]} : vector<9x128xf32> to vector<1x128xf32>
    %69 = vector.broadcast %68 : vector<1x128xf32> to vector<16x128xf32>
    %70 = arith.mulf %62, %69 : vector<16x128xf32>
    %71 = arith.addf %67, %70 : vector<16x128xf32>
    %c120_i32_24 = arith.constant 120 : i32
    %72 = tpu.dynamic_rotate %62 by %c120_i32_24 dim 1 : vector<16x128xf32>, i32 -> vector<16x128xf32>
    %73 = vector.extract_strided_slice %60 {offsets = [2, 0], sizes = [1, 128], strides = [1, 1]} : vector<9x128xf32> to vector<1x128xf32>
    %74 = vector.broadcast %73 : vector<1x128xf32> to vector<16x128xf32>
    %75 = arith.mulf %72, %74 : vector<16x128xf32>
    %76 = arith.addf %71, %75 : vector<16x128xf32>
    %77 = vector.extract_strided_slice %59 {offsets = [1, 0], sizes = [16, 128], strides = [1, 1]} : vector<18x128xf32> to vector<16x128xf32>
    %c8_i32_25 = arith.constant 8 : i32
    %78 = tpu.dynamic_rotate %77 by %c8_i32_25 dim 1 : vector<16x128xf32>, i32 -> vector<16x128xf32>
    %79 = vector.extract_strided_slice %60 {offsets = [3, 0], sizes = [1, 128], strides = [1, 1]} : vector<9x128xf32> to vector<1x128xf32>
    %80 = vector.broadcast %79 : vector<1x128xf32> to vector<16x128xf32>
    %81 = arith.mulf %78, %80 : vector<16x128xf32>
    %82 = arith.addf %76, %81 : vector<16x128xf32>
    %83 = vector.extract_strided_slice %60 {offsets = [4, 0], sizes = [1, 128], strides = [1, 1]} : vector<9x128xf32> to vector<1x128xf32>
    %84 = vector.broadcast %83 : vector<1x128xf32> to vector<16x128xf32>
    %85 = arith.mulf %77, %84 : vector<16x128xf32>
    %86 = arith.addf %82, %85 : vector<16x128xf32>
    %c120_i32_26 = arith.constant 120 : i32
    %87 = tpu.dynamic_rotate %77 by %c120_i32_26 dim 1 : vector<16x128xf32>, i32 -> vector<16x128xf32>
    %88 = vector.extract_strided_slice %60 {offsets = [5, 0], sizes = [1, 128], strides = [1, 1]} : vector<9x128xf32> to vector<1x128xf32>
    %89 = vector.broadcast %88 : vector<1x128xf32> to vector<16x128xf32>
    %90 = arith.mulf %87, %89 : vector<16x128xf32>
    %91 = arith.addf %86, %90 : vector<16x128xf32>
    %92 = vector.extract_strided_slice %59 {offsets = [2, 0], sizes = [16, 128], strides = [1, 1]} : vector<18x128xf32> to vector<16x128xf32>
    %c8_i32_27 = arith.constant 8 : i32
    %93 = tpu.dynamic_rotate %92 by %c8_i32_27 dim 1 : vector<16x128xf32>, i32 -> vector<16x128xf32>
    %94 = vector.extract_strided_slice %60 {offsets = [6, 0], sizes = [1, 128], strides = [1, 1]} : vector<9x128xf32> to vector<1x128xf32>
    %95 = vector.broadcast %94 : vector<1x128xf32> to vector<16x128xf32>
    %96 = arith.mulf %93, %95 : vector<16x128xf32>
    %97 = arith.addf %91, %96 : vector<16x128xf32>
    %98 = vector.extract_strided_slice %60 {offsets = [7, 0], sizes = [1, 128], strides = [1, 1]} : vector<9x128xf32> to vector<1x128xf32>
    %99 = vector.broadcast %98 : vector<1x128xf32> to vector<16x128xf32>
    %100 = arith.mulf %92, %99 : vector<16x128xf32>
    %101 = arith.addf %97, %100 : vector<16x128xf32>
    %c120_i32_28 = arith.constant 120 : i32
    %102 = tpu.dynamic_rotate %92 by %c120_i32_28 dim 1 : vector<16x128xf32>, i32 -> vector<16x128xf32>
    %103 = vector.extract_strided_slice %60 {offsets = [8, 0], sizes = [1, 128], strides = [1, 1]} : vector<9x128xf32> to vector<1x128xf32>
    %104 = vector.broadcast %103 : vector<1x128xf32> to vector<16x128xf32>
    %105 = arith.mulf %102, %104 : vector<16x128xf32>
    %106 = arith.addf %101, %105 : vector<16x128xf32>
    %c0_29 = arith.constant 0 : index
    %c0_30 = arith.constant 0 : index
    %107 = vector.load %arg6[%c0_29, %c0_30] : memref<128x128xf32, #tpu.memory_space<vmem>>, vector<128x128xf32>
    %cst_31 = arith.constant dense<0.000000e+00> : vector<16x128xf32>
    %108 = tpu.matmul %106, %107, %cst_31 {dimension_numbers = #tpu.dot_dimension_numbers<[1], [0], [0], [1], [0, 0, 1, 1], [], []>} : vector<16x128xf32>, vector<128x128xf32>, vector<16x128xf32> -> vector<16x128xf32>
    %c0_32 = arith.constant 0 : index
    %c0_33 = arith.constant 0 : index
    %109 = vector.load %arg7[%c0_32, %c0_33] : memref<1x128xf32, #tpu.memory_space<vmem>>, vector<1x128xf32>
    %110 = vector.broadcast %109 : vector<1x128xf32> to vector<16x128xf32>
    %111 = arith.addf %108, %110 : vector<16x128xf32>
    %cst_34 = arith.constant 0.000000e+00 : f32
    %112 = vector.broadcast %cst_34 : f32 to vector<16x128xf32>
    %113 = arith.maximumf %111, %112 : vector<16x128xf32>
    %c0_35 = arith.constant 0 : index
    %c0_36 = arith.constant 0 : index
    %c0_37 = arith.constant 0 : index
    %114 = vector.load %arg8[%c0_35, %c0_36, %c0_37] : memref<1x16x128xf32, #tpu.memory_space<vmem>>, vector<1x16x128xf32>
    %115 = vector.shape_cast %114 : vector<1x16x128xf32> to vector<16x128xf32>
    %116 = vector.shape_cast %113 : vector<16x128xf32> to vector<1x16x128xf32>
    tpu.vector_store %arg8[%c0_35, %c0_36, %c0_37], %116 {strides = array<i32>} : memref<1x16x128xf32, #tpu.memory_space<vmem>>, vector<1x16x128xf32>,
    return
  }
  func.func @transform_0(%arg0: i32) -> (i32, i32, i32) {
    %c0_i32 = arith.constant 0 : i32
    %c0_i32_0 = arith.constant 0 : i32
    %c0_i32_1 = arith.constant 0 : i32
    return %arg0, %c0_i32, %c0_i32_0 : i32, i32, i32
  }
  func.func @transform_1(%arg0: i32) -> (i32, i32) {
    %c0_i32 = arith.constant 0 : i32
    %c0_i32_0 = arith.constant 0 : i32
    %c0_i32_1 = arith.constant 0 : i32
    return %c0_i32, %c0_i32_0 : i32, i32
  }
  func.func @transform_2(%arg0: i32) -> (i32, i32) {
    %c0_i32 = arith.constant 0 : i32
    %c0_i32_0 = arith.constant 0 : i32
    %c0_i32_1 = arith.constant 0 : i32
    return %c0_i32, %c0_i32_0 : i32, i32
  }
  func.func @transform_3(%arg0: i32) -> (i32, i32) {
    %c0_i32 = arith.constant 0 : i32
    %c0_i32_0 = arith.constant 0 : i32
    %c0_i32_1 = arith.constant 0 : i32
    return %c0_i32, %c0_i32_0 : i32, i32
  }
  func.func @transform_4(%arg0: i32) -> (i32, i32) {
    %c0_i32 = arith.constant 0 : i32
    %c0_i32_0 = arith.constant 0 : i32
    %c0_i32_1 = arith.constant 0 : i32
    return %c0_i32, %c0_i32_0 : i32, i32
  }
  func.func @transform_5(%arg0: i32) -> (i32, i32) {
    %c0_i32 = arith.constant 0 : i32
    %c0_i32_0 = arith.constant 0 : i32
    %c0_i32_1 = arith.constant 0 : i32
    return %c0_i32, %c0_i32_0 : i32, i32
  }
  func.func @transform_6(%arg0: i32) -> (i32, i32) {
    %c0_i32 = arith.constant 0 : i32
    %c0_i32_0 = arith.constant 0 : i32
    %c0_i32_1 = arith.constant 0 : i32
    return %c0_i32, %c0_i32_0 : i32, i32
  }
  func.func @transform_7(%arg0: i32) -> (i32, i32, i32) {
    %c0_i32 = arith.constant 0 : i32
    %c0_i32_0 = arith.constant 0 : i32
    %c0_i32_1 = arith.constant 0 : i32
    return %arg0, %c0_i32, %c0_i32_0 : i32, i32, i32
  }
}

</mosaic_0001>

<llo_original>
// kernel: tile.13
$region0: #{tile.13}
  #allocation0 [shape = 's32[1]{0}', space=sflag, size = 0x4, scoped, tag = 'scoped memory for tile.13']
  %s0 = inlined_call_operand.vmem [shape: f32[8], index: 0, kind: input, shape index: {}]
  %s1 = inlined_call_operand.vmem [shape: f32[16,8], index: 1, kind: output, shape index: {}]
  // Predicated region
  $region2: #{tile.13} parent=0 // pred_check
    _
  $region3: #{tile.13} parent=0 // pred_check_branch
    %3 = sbr.rel (0) target = $region5
  $region4: #{tile.13} parent=0 // pred_region
    _
  $region5: #{tile.13} parent=0 // pred_fallthru
    _
  %v4 = vld [vmem:[%s0] ss:$0 sm:$0xff]
  %5 = vst [vmem:[%s1] sm:$0xff] %v4
  %s6 = scalar_lea.vmem %s1, 8
  %7 = vst [vmem:[%s6] sm:$0xff] %v4

// kernel: tile.14
$region0: #{tile.14}
  %s0 = inlined_call_operand.vmem [shape: f32[16,8], index: 0, kind: input, shape index: {}]
  %s1 = inlined_call_operand.vmem [shape: f32[1,128], index: 1, kind: output, shape index: {}]
  $region1: #{tile.14} parent=0
    #allocation0 [shape = 'u8[4096]{0}', space=vmem, size = 0x1000, scoped, tag = 'scoped mem for output reshape']
    %v2 = vld [vmem:[%s0] sm:$0x1]
    %vm3 = vcmask 64512
    %4 = vst.msk [vmem:[#allocation0] sm:$0x1] %vm3, %v2
    %s5 = scalar_lea.vmem %s0, 15
    %v6 = vld [vmem:[%s5] sm:$0x1]
    %7 = vrot.lane.b32.xlu0 %v6, 120
    %v8 = vpop.permute.xlu0 %7
    %vm9 = vcmask 1048512
    %10 = vst.msk [vmem:[#allocation0] sm:$0x1] %vm9, %v8
    %s11 = scalar_lea.vmem %s0, 14
    %v12 = vld [vmem:[%s11] sm:$0x1]
    %13 = vrot.lane.b32.xlu0 %v12, 112
    %v14 = vpop.permute.xlu0 %13
    %vm15 = vcmask 982912
    %16 = vst.msk [vmem:[#allocation0] sm:$0x1] %vm15, %v14
    %s17 = scalar_lea.vmem %s0, 13
    %v18 = vld [vmem:[%s17] sm:$0x1]
    %19 = vrot.lane.b32.xlu0 %v18, 104
    %v20 = vpop.permute.xlu0 %19
    %vm21 = vcmask 917312
    %22 = vst.msk [vmem:[#allocation0] sm:$0x1] %vm21, %v20
    %s23 = scalar_lea.vmem %s0, 12
    %v24 = vld [vmem:[%s23] sm:$0x1]
    %25 = vrot.lane.b32.xlu0 %v24, 96
    %v26 = vpop.permute.xlu0 %25
    %vm27 = vcmask 851712
    %28 = vst.msk [vmem:[#allocation0] sm:$0x1] %vm27, %v26
    %s29 = scalar_lea.vmem %s0, 11
    %v30 = vld [vmem:[%s29] sm:$0x1]
    %31 = vrot.lane.b32.xlu0 %v30, 88
    %v32 = vpop.permute.xlu0 %31
    %vm33 = vcmask 786112
    %34 = vst.msk [vmem:[#allocation0] sm:$0x1] %vm33, %v32
    %s35 = scalar_lea.vmem %s0, 10
    %v36 = vld [vmem:[%s35] sm:$0x1]
    %37 = vrot.lane.b32.xlu0 %v36, 80
    %v38 = vpop.permute.xlu0 %37
    %vm39 = vcmask 720512
    %40 = vst.msk [vmem:[#allocation0] sm:$0x1] %vm39, %v38
    %s41 = scalar_lea.vmem %s0, 9
    %v42 = vld [vmem:[%s41] sm:$0x1]
    %43 = vrot.lane.b32.xlu0 %v42, 72
    %v44 = vpop.permute.xlu0 %43
    %vm45 = vcmask 654912
    %46 = vst.msk [vmem:[#allocation0] sm:$0x1] %vm45, %v44
    %s47 = scalar_lea.vmem %s0, 8
    %v48 = vld [vmem:[%s47] sm:$0x1]
    %49 = vrot.lane.b32.xlu0 %v48, 64
    %v50 = vpop.permute.xlu0 %49
    %vm51 = vcmask 589312
    %52 = vst.msk [vmem:[#allocation0] sm:$0x1] %vm51, %v50
    %s53 = scalar_lea.vmem %s0, 7
    %v54 = vld [vmem:[%s53] sm:$0x1]
    %55 = vrot.lane.b32.xlu0 %v54, 56
    %v56 = vpop.permute.xlu0 %55
    %vm57 = vcmask 523712
    %58 = vst.msk [vmem:[#allocation0] sm:$0x1] %vm57, %v56
    %s59 = scalar_lea.vmem %s0, 6
    %v60 = vld [vmem:[%s59] sm:$0x1]
    %61 = vrot.lane.b32.xlu0 %v60, 48
    %v62 = vpop.permute.xlu0 %61
    %vm63 = vcmask 458112
    %64 = vst.msk [vmem:[#allocation0] sm:$0x1] %vm63, %v62
    %s65 = scalar_lea.vmem %s0, 5
    %v66 = vld [vmem:[%s65] sm:$0x1]
    %67 = vrot.lane.b32.xlu0 %v66, 40
    %v68 = vpop.permute.xlu0 %67
    %vm69 = vcmask 392512
    %70 = vst.msk [vmem:[#allocation0] sm:$0x1] %vm69, %v68
    %s71 = scalar_lea.vmem %s0, 4
    %v72 = vld [vmem:[%s71] sm:$0x1]
    %73 = vrot.lane.b32.xlu0 %v72, 32
    %v74 = vpop.permute.xlu0 %73
    %vm75 = vcmask 326912
    %76 = vst.msk [vmem:[#allocation0] sm:$0x1] %vm75, %v74
    %s77 = scalar_lea.vmem %s0, 3
    %v78 = vld [vmem:[%s77] sm:$0x1]
    %79 = vrot.lane.b32.xlu0 %v78, 24
    %v80 = vpop.permute.xlu0 %79
    %vm81 = vcmask 261312
    %82 = vst.msk [vmem:[#allocation0] sm:$0x1] %vm81, %v80
    %s83 = scalar_lea.vmem %s0, 2
    %v84 = vld [vmem:[%s83] sm:$0x1]
    %85 = vrot.lane.b32.xlu0 %v84, 16
    %v86 = vpop.permute.xlu0 %85
    %vm87 = vcmask 195712
    %88 = vst.msk [vmem:[#allocation0] sm:$0x1] %vm87, %v86
    %s89 = scalar_lea.vmem %s0, 1
    %v90 = vld [vmem:[%s89] sm:$0x1]
    %91 = vrot.lane.b32.xlu0 %v90, 8
    %v92 = vpop.permute.xlu0 %91
    %vm93 = vcmask 130112
    %94 = vst.msk [vmem:[#allocation0] sm:$0x1] %vm93, %v92
    %s96 = sshllo.u32 0, 1
    %v98 = vld [vmem:[#allocation0] sm:%s96]
    %s99 = sshllo.u32 0, 1
    %100 = vst [vmem:[%s1] sm:%s99] %v98

// kernel: up_forward.1
$region0: #{up_forward.1}
  #allocation0 [shape = 'u32[]', space=smem, size = 0x4, offset = 0x4, fixed_abs, tag = 'smem constant byte address 0x4 - core index']
  #allocation1 [shape = 'u32[144,128]{1,0:T(1,128)}', space=vmem, size = 0x12000, scoped, tag = 'internal scratch']
  #allocation2 [shape = 'f32[18,128]{1,0:T(8,128)}', space=vmem, size = 0x3000, scoped, tag = 'scratch operand']
  %s0 = inlined_call_operand.vmem [shape: f32[2,18,128], index: 0, kind: input, shape index: {}]
  %s1 = inlined_call_operand.vmem [shape: f32[9,128], index: 1, kind: input, shape index: {}]
  %s2 = inlined_call_operand.vmem [shape: f32[128,128], index: 2, kind: input, shape index: {}]
  %s3 = inlined_call_operand.vmem [shape: f32[1,128], index: 3, kind: input, shape index: {}]
  %s4 = inlined_call_operand.vmem [shape: f32[9,128], index: 4, kind: input, shape index: {}]
  %s5 = inlined_call_operand.vmem [shape: f32[128,128], index: 5, kind: input, shape index: {}]
  %s6 = inlined_call_operand.vmem [shape: f32[1,128], index: 6, kind: input, shape index: {}]
  %s7 = inlined_call_operand.vmem [shape: f32[2,16,128], index: 7, kind: output, shape index: {}]
  %s8 = sld [smem:[#allocation0]]
  $region61: #{up_forward.1} parent=0
    _
  %s10 = ssub.s32 1, %s8
  %s11 = scalar_select 0, %s10, %s8
  loop: start=0, step=1, limit=4
  $region2: #{up_forward.1} parent=0 // loop_pre_header
    _
  $region3: #{up_forward.1} parent=0 // loop_header
    %s13 = sphi 0, %s17
    %p14 = scmp.ge.s32.totalorder %s13, 4
    %s23 = sphi 0, %s25
    %s26 = sphi 0, %s23
    %s27 = sphi 0, %s26
    %s43 = sphi 0, %s27
    %s47 = sphi 0, %s47
    %s49 = sphi 0, %s47
    %s50 = sphi 0, %s49
    %s64 = sphi 0, %s50
    %s68 = sphi 0, %s68
    %s70 = sphi 0, %s68
    %s71 = sphi 0, %s70
    %s85 = sphi 0, %s71
    %s89 = sphi 0, %s89
    %s91 = sphi 0, %s89
    %s92 = sphi 0, %s91
    %s106 = sphi 0, %s92
    %s110 = sphi 0, %s110
    %s112 = sphi 0, %s110
    %s113 = sphi 0, %s112
    %s127 = sphi 0, %s113
    %s131 = sphi 0, %s131
    %s133 = sphi 0, %s131
    %s134 = sphi 0, %s133
    %s148 = sphi 0, %s134
    %s152 = sphi 0, %s152
    %s154 = sphi 0, %s152
    %s155 = sphi 0, %s154
    %s169 = sphi 0, %s155
    %s175 = sphi 0, %s177
    %s178 = sphi 0, %s175
    %s179 = sphi 0, %s178
    %s195 = sphi 0, %s179
  $region4: #{up_forward.1} parent=0 // loop_header_branch
    %16 = sbr.rel (%p14) target = $region8
  $region5: #{up_forward.1} parent=0 // loop_body
    %s18 = ssub.s32 %s13, 1
    %s19 = ssub.s32 %s13, 2
    %s20 = sadd.s32 %s13, 1
    %s21 = ssub.s32 %s13, %s20
    %p22 = scmp.eq.s32.totalorder %s21, 0
    %s24 = sadd.s32 %s23, 1
    %s25 = scalar_select %p22, %s23, %s24
    %p28 = pneg %p22
    %p29 = scmp.eq.s32.totalorder %s13, 1
    %p30 = por %p28, %p29
    %p31 = scmp.ne.s32.totalorder %s23, %s26
    %p32 = scmp.eq.s32.totalorder %s13, 0
    %p33 = por %p31, %p32
    %p34 = scmp.ne.s32.totalorder %s23, %s26
    %p35 = scmp.eq.s32.totalorder %s18, 1
    %p36 = por %p34, %p35
    %p37 = scmp.ne.s32.totalorder %s26, %s27
    %p38 = scmp.eq.s32.totalorder %s18, 0
    %p39 = por %p37, %p38
    %p40 = scmp.ne.s32.totalorder %s26, %s27
    %p41 = scmp.eq.s32.totalorder %s19, 1
    %p42 = por %p40, %p41
    %p44 = scmp.ne.s32.totalorder %s27, %s43
    %p45 = scmp.eq.s32.totalorder %s19, 0
    %p46 = por %p44, %p45
    %s48 = sadd.s32 %s47, 1
    %p51 = scmp.eq.s32.totalorder %s13, 1
    %p52 = scmp.ne.s32.totalorder %s47, %s49
    %p53 = scmp.eq.s32.totalorder %s13, 0
    %p54 = por %p52, %p53
    %p55 = scmp.ne.s32.totalorder %s47, %s49
    %p56 = scmp.eq.s32.totalorder %s18, 1
    %p57 = por %p55, %p56
    %p58 = scmp.ne.s32.totalorder %s49, %s50
    %p59 = scmp.eq.s32.totalorder %s18, 0
    %p60 = por %p58, %p59
    %p61 = scmp.ne.s32.totalorder %s49, %s50
    %p62 = scmp.eq.s32.totalorder %s19, 1
    %p63 = por %p61, %p62
    %p65 = scmp.ne.s32.totalorder %s50, %s64
    %p66 = scmp.eq.s32.totalorder %s19, 0
    %p67 = por %p65, %p66
    %s69 = sadd.s32 %s68, 1
    %p72 = scmp.eq.s32.totalorder %s13, 1
    %p73 = scmp.ne.s32.totalorder %s68, %s70
    %p74 = scmp.eq.s32.totalorder %s13, 0
    %p75 = por %p73, %p74
    %p76 = scmp.ne.s32.totalorder %s68, %s70
    %p77 = scmp.eq.s32.totalorder %s18, 1
    %p78 = por %p76, %p77
    %p79 = scmp.ne.s32.totalorder %s70, %s71
    %p80 = scmp.eq.s32.totalorder %s18, 0
    %p81 = por %p79, %p80
    %p82 = scmp.ne.s32.totalorder %s70, %s71
    %p83 = scmp.eq.s32.totalorder %s19, 1
    %p84 = por %p82, %p83
    %p86 = scmp.ne.s32.totalorder %s71, %s85
    %p87 = scmp.eq.s32.totalorder %s19, 0
    %p88 = por %p86, %p87
    %s90 = sadd.s32 %s89, 1
    %p93 = scmp.eq.s32.totalorder %s13, 1
    %p94 = scmp.ne.s32.totalorder %s89, %s91
    %p95 = scmp.eq.s32.totalorder %s13, 0
    %p96 = por %p94, %p95
    %p97 = scmp.ne.s32.totalorder %s89, %s91
    %p98 = scmp.eq.s32.totalorder %s18, 1
    %p99 = por %p97, %p98
    %p100 = scmp.ne.s32.totalorder %s91, %s92
    %p101 = scmp.eq.s32.totalorder %s18, 0
    %p102 = por %p100, %p101
    %p103 = scmp.ne.s32.totalorder %s91, %s92
    %p104 = scmp.eq.s32.totalorder %s19, 1
    %p105 = por %p103, %p104
    %p107 = scmp.ne.s32.totalorder %s92, %s106
    %p108 = scmp.eq.s32.totalorder %s19, 0
    %p109 = por %p107, %p108
    %s111 = sadd.s32 %s110, 1
    %p114 = scmp.eq.s32.totalorder %s13, 1
    %p115 = scmp.ne.s32.totalorder %s110, %s112
    %p116 = scmp.eq.s32.totalorder %s13, 0
    %p117 = por %p115, %p116
    %p118 = scmp.ne.s32.totalorder %s110, %s112
    %p119 = scmp.eq.s32.totalorder %s18, 1
    %p120 = por %p118, %p119
    %p121 = scmp.ne.s32.totalorder %s112, %s113
    %p122 = scmp.eq.s32.totalorder %s18, 0
    %p123 = por %p121, %p122
    %p124 = scmp.ne.s32.totalorder %s112, %s113
    %p125 = scmp.eq.s32.totalorder %s19, 1
    %p126 = por %p124, %p125
    %p128 = scmp.ne.s32.totalorder %s113, %s127
    %p129 = scmp.eq.s32.totalorder %s19, 0
    %p130 = por %p128, %p129
    %s132 = sadd.s32 %s131, 1
    %p135 = scmp.eq.s32.totalorder %s13, 1
    %p136 = scmp.ne.s32.totalorder %s131, %s133
    %p137 = scmp.eq.s32.totalorder %s13, 0
    %p138 = por %p136, %p137
    %p139 = scmp.ne.s32.totalorder %s131, %s133
    %p140 = scmp.eq.s32.totalorder %s18, 1
    %p141 = por %p139, %p140
    %p142 = scmp.ne.s32.totalorder %s133, %s134
    %p143 = scmp.eq.s32.totalorder %s18, 0
    %p144 = por %p142, %p143
    %p145 = scmp.ne.s32.totalorder %s133, %s134
    %p146 = scmp.eq.s32.totalorder %s19, 1
    %p147 = por %p145, %p146
    %p149 = scmp.ne.s32.totalorder %s134, %s148
    %p150 = scmp.eq.s32.totalorder %s19, 0
    %p151 = por %p149, %p150
    %s153 = sadd.s32 %s152, 1
    %p156 = scmp.eq.s32.totalorder %s13, 1
    %p157 = scmp.ne.s32.totalorder %s152, %s154
    %p158 = scmp.eq.s32.totalorder %s13, 0
    %p159 = por %p157, %p158
    %p160 = scmp.ne.s32.totalorder %s152, %s154
    %p161 = scmp.eq.s32.totalorder %s18, 1
    %p162 = por %p160, %p161
    %p163 = scmp.ne.s32.totalorder %s154, %s155
    %p164 = scmp.eq.s32.totalorder %s18, 0
    %p165 = por %p163, %p164
    %p166 = scmp.ne.s32.totalorder %s154, %s155
    %p167 = scmp.eq.s32.totalorder %s19, 1
    %p168 = por %p166, %p167
    %p170 = scmp.ne.s32.totalorder %s155, %s169
    %p171 = scmp.eq.s32.totalorder %s19, 0
    %p172 = por %p170, %p171
    %s173 = ssub.s32 %s13, %s20
    %p174 = scmp.eq.s32.totalorder %s173, 0
    %s176 = sadd.s32 %s175, 1
    %s177 = scalar_select %p174, %s175, %s176
    %p180 = pneg %p174
    %p181 = scmp.eq.s32.totalorder %s13, 1
    %p182 = por %p180, %p181
    %p183 = scmp.ne.s32.totalorder %s175, %s178
    %p184 = scmp.eq.s32.totalorder %s13, 0
    %p185 = por %p183, %p184
    %p186 = scmp.ne.s32.totalorder %s175, %s178
    %p187 = scmp.eq.s32.totalorder %s18, 1
    %p188 = por %p186, %p187
    %p189 = scmp.ne.s32.totalorder %s178, %s179
    %p190 = scmp.eq.s32.totalorder %s18, 0
    %p191 = por %p189, %p190
    %p192 = scmp.ne.s32.totalorder %s178, %s179
    %p193 = scmp.eq.s32.totalorder %s19, 1
    %p194 = por %p192, %p193
    %p196 = scmp.ne.s32.totalorder %s179, %s195
    %p197 = scmp.eq.s32.totalorder %s19, 0
    %p198 = por %p196, %p197
    %p199 = scmp.le.s32.totalorder 1, %s13
    %p200 = scmp.lt.s32.totalorder %s13, 3
    %p201 = pnand %p199, %p200
    %p202 = pneg %p201
    // Predicated region
    $region9: #{up_forward.1} parent=5 // pred_check
      _
    $region10: #{up_forward.1} parent=5 // pred_check_branch
      %204 = sbr.rel (%p201) target = $region12
    $region11: #{up_forward.1} parent=5 // pred_region
      %s205 = ssub.s32 %s13, 1
      // Predicated region
      $region13: #{up_forward.1} parent=11 // pred_check
        %p206 = pneg %p60
      $region14: #{up_forward.1} parent=11 // pred_check_branch
        %208 = sbr.rel (%p206) target = $region16
      $region15: #{up_forward.1} parent=11 // pred_region
        _
      $region16: #{up_forward.1} parent=11 // pred_fallthru
        _
      // Predicated region
      $region17: #{up_forward.1} parent=11 // pred_check
        %p209 = pneg %p81
      $region18: #{up_forward.1} parent=11 // pred_check_branch
        %211 = sbr.rel (%p209) target = $region20
      $region19: #{up_forward.1} parent=11 // pred_region
        _
      $region20: #{up_forward.1} parent=11 // pred_fallthru
        _
      // Predicated region
      $region21: #{up_forward.1} parent=11 // pred_check
        %p212 = pneg %p102
      $region22: #{up_forward.1} parent=11 // pred_check_branch
        %214 = sbr.rel (%p212) target = $region24
      $region23: #{up_forward.1} parent=11 // pred_region
        _
      $region24: #{up_forward.1} parent=11 // pred_fallthru
        _
      // Predicated region
      $region25: #{up_forward.1} parent=11 // pred_check
        %p215 = pneg %p123
      $region26: #{up_forward.1} parent=11 // pred_check_branch
        %217 = sbr.rel (%p215) target = $region28
      $region27: #{up_forward.1} parent=11 // pred_region
        _
      $region28: #{up_forward.1} parent=11 // pred_fallthru
        _
      // Predicated region
      $region29: #{up_forward.1} parent=11 // pred_check
        %p218 = pneg %p144
      $region30: #{up_forward.1} parent=11 // pred_check_branch
        %220 = sbr.rel (%p218) target = $region32
      $region31: #{up_forward.1} parent=11 // pred_region
        _
      $region32: #{up_forward.1} parent=11 // pred_fallthru
        _
      // Predicated region
      $region33: #{up_forward.1} parent=11 // pred_check
        %p221 = pneg %p165
      $region34: #{up_forward.1} parent=11 // pred_check_branch
        %223 = sbr.rel (%p221) target = $region36
      $region35: #{up_forward.1} parent=11 // pred_region
        _
      $region36: #{up_forward.1} parent=11 // pred_fallthru
        _
    $region12: #{up_forward.1} parent=5 // pred_fallthru
      _
    %p224 = scmp.lt.s32.totalorder %s13, 2
    // Predicated region
    $region37: #{up_forward.1} parent=5 // pred_check
      %p225 = pneg %p224
    $region38: #{up_forward.1} parent=5 // pred_check_branch
      %227 = sbr.rel (%p225) target = $region40
    $region39: #{up_forward.1} parent=5 // pred_region
      // Predicated region
      $region41: #{up_forward.1} parent=39 // pred_check
        %p228 = pneg %p33
      $region42: #{up_forward.1} parent=39 // pred_check_branch
        %230 = sbr.rel (%p228) target = $region44
      $region43: #{up_forward.1} parent=39 // pred_region
        %p231 = scmp.lt.s32.totalorder %s13, 1
        %s232 = scalar_select %p231, %s13, 1
        %s233 = smul.addr %s232, 3
        %s234 = smul.addr %s233, 8
        %s235 = scalar_lea.vmem %s0, %s234
      $region44: #{up_forward.1} parent=39 // pred_fallthru
        _
    $region40: #{up_forward.1} parent=5 // pred_fallthru
      _
    %p236 = scmp.le.s32.totalorder 1, %s13
    %p237 = scmp.lt.s32.totalorder %s13, 3
    %p238 = pnand %p236, %p237
    %p239 = pneg %p238
    // Predicated region
    $region45: #{up_forward.1} parent=5 // pred_check
      _
    $region46: #{up_forward.1} parent=5 // pred_check_branch
      %241 = sbr.rel (%p238) target = $region48
    $region47: #{up_forward.1} parent=5 // pred_region
      %s242 = ssub.s32 %s13, 1
      %p243 = scmp.lt.s32.totalorder %s18, 1
      %s244 = scalar_select %p243, %s18, 1
      %s245 = smul.addr %s244, 3
      %s246 = smul.addr %s245, 8
      %s247 = scalar_lea.vmem %s0, %s246
      %p248 = pneg %p39
      %p249 = pneg %p36
      %p250 = pneg %p60
      %p251 = pneg %p57
      %p252 = pneg %p81
      %p253 = pneg %p78
      %p254 = pneg %p102
      %p255 = pneg %p99
      %p256 = pneg %p123
      %p257 = pneg %p120
      %p258 = pneg %p144
      %p259 = pneg %p141
      %p260 = pneg %p165
      %p261 = pneg %p162
      %p262 = pneg %p191
      %p263 = pneg %p188
      %p264 = scmp.lt.s32.totalorder %s18, 1
      %s265 = scalar_select %p264, %s18, 1
      %s266 = smul.addr %s265, 2
      %s267 = smul.addr %s266, 8
      %s268 = scalar_lea.vmem %s7, %s267
      %p269 = scmp.lt.s32.totalorder %s18, 1
      %s270 = scalar_select %p269, %s18, 1
      %s271 = smul.addr %s270, 3
      %s272 = smul.addr %s271, 8
      %s273 = scalar_lea.vmem %s0, %s272
      %p274 = scmp.lt.s32.totalorder %s18, 1
      %s275 = scalar_select %p274, %s18, 1
      %s276 = smul.addr %s275, 2
      %s277 = smul.addr %s276, 8
      %s278 = scalar_lea.vmem %s7, %s277
      %v279 = vld [vmem:[%s273] sm:$0xff]
      %v280 = vld [vmem:[%s273 + $0x8] sm:$0xff]
      %v281 = vld [vmem:[%s273 + $0x10] sm:$0x3]
      %v282 = vld [vmem:[%s1] sm:$0xff]
      %v283 = vld [vmem:[%s1 + $0x8] sm:$0x1]
      %284 = vrot.lane.b32.xlu0 %v279, 8
      %v285 = vpop.permute.xlu0 %284
      %286 = vrot.lane.b32.xlu0 %v280, 8
      %v287 = vpop.permute.xlu0 %286
      %v288 = vlaneseq
      %v289 = vshrl.u32 %v288, 7
      %v290 = vsub.s32 0, %v289
      %v291 = vrot.slane %v282, %v290
      %v292 = vmul.f32 %v285, %v291
      %v293 = vmul.f32 %v287, %v291
      %v294 = vadd.f32 %v292, 0.0
      %v295 = vadd.f32 %v293, 0.0
      %v296 = vlaneseq
      %v297 = vshrl.u32 %v296, 7
      %v298 = vsub.s32 1, %v297
      %v299 = vrot.slane %v282, %v298
      %v300 = vmul.f32 %v279, %v299
      %v301 = vmul.f32 %v280, %v299
      %v302 = vadd.f32 %v294, %v300
      %v303 = vadd.f32 %v295, %v301
      %304 = vrot.lane.b32.xlu0 %v279, 120
      %v305 = vpop.permute.xlu0 %304
      %306 = vrot.lane.b32.xlu0 %v280, 120
      %v307 = vpop.permute.xlu0 %306
      %v308 = vlaneseq
      %v309 = vshrl.u32 %v308, 7
      %v310 = vsub.s32 2, %v309
      %v311 = vrot.slane %v282, %v310
      %v312 = vmul.f32 %v305, %v311
      %v313 = vmul.f32 %v307, %v311
      %v314 = vadd.f32 %v302, %v312
      %v315 = vadd.f32 %v303, %v313
      %vm319 = vcmask 1046528
      %v320 = vrot.slane %v279, 1
      %v321 = vrot.slane %v280, 1
      %v322 = vsel %vm319, %v320, %v321
      %v323 = vrot.slane %v281, 1
      %v324 = vsel %vm319, %v321, %v323
      %327 = vrot.lane.b32.xlu0 %v322, 8
      %v328 = vpop.permute.xlu0 %327
      %329 = vrot.lane.b32.xlu0 %v324, 8
      %v330 = vpop.permute.xlu0 %329
      %v331 = vlaneseq
      %v332 = vshrl.u32 %v331, 7
      %v333 = vsub.s32 3, %v332
      %v334 = vrot.slane %v282, %v333
      %v335 = vmul.f32 %v328, %v334
      %v336 = vmul.f32 %v330, %v334
      %v337 = vadd.f32 %v314, %v335
      %v338 = vadd.f32 %v315, %v336
      %v339 = vlaneseq
      %v340 = vshrl.u32 %v339, 7
      %v341 = vsub.s32 4, %v340
      %v342 = vrot.slane %v282, %v341
      %v343 = vmul.f32 %v279, %v342
      %v344 = vmul.f32 %v280, %v342
      %v345 = vmul.f32 %v281, %v342
      %v349 = vrot.slane %v343, 1
      %v350 = vrot.slane %v344, 1
      %v351 = vsel %vm319, %v349, %v350
      %v352 = vrot.slane %v345, 1
      %v353 = vsel %vm319, %v350, %v352
      %v356 = vadd.f32 %v337, %v351
      %v357 = vadd.f32 %v338, %v353
      %358 = vrot.lane.b32.xlu0 %v322, 120
      %v359 = vpop.permute.xlu0 %358
      %360 = vrot.lane.b32.xlu0 %v324, 120
      %v361 = vpop.permute.xlu0 %360
      %v362 = vlaneseq
      %v363 = vshrl.u32 %v362, 7
      %v364 = vsub.s32 5, %v363
      %v365 = vrot.slane %v282, %v364
      %v366 = vmul.f32 %v359, %v365
      %v367 = vmul.f32 %v361, %v365
      %v368 = vadd.f32 %v356, %v366
      %v369 = vadd.f32 %v357, %v367
      %vm370 = vcmask 1045504
      %v371 = vrot.slane %v279, 2
      %v372 = vrot.slane %v280, 2
      %v373 = vsel %vm370, %v371, %v372
      %v374 = vrot.slane %v281, 2
      %v375 = vsel %vm370, %v372, %v374
      %378 = vrot.lane.b32.xlu0 %v373, 8
      %v379 = vpop.permute.xlu0 %378
      %380 = vrot.lane.b32.xlu0 %v375, 8
      %v381 = vpop.permute.xlu0 %380
      %v382 = vlaneseq
      %v383 = vshrl.u32 %v382, 7
      %v384 = vsub.s32 6, %v383
      %v385 = vrot.slane %v282, %v384
      %v386 = vmul.f32 %v379, %v385
      %v387 = vmul.f32 %v381, %v385
      %v388 = vadd.f32 %v368, %v386
      %v389 = vadd.f32 %v369, %v387
      %v390 = vlaneseq
      %v391 = vshrl.u32 %v390, 7
      %v392 = vsub.s32 7, %v391
      %v393 = vrot.slane %v282, %v392
      %v394 = vmul.f32 %v279, %v393
      %v395 = vmul.f32 %v280, %v393
      %v396 = vmul.f32 %v281, %v393
      %v400 = vrot.slane %v394, 2
      %v401 = vrot.slane %v395, 2
      %v402 = vsel %vm370, %v400, %v401
      %v403 = vrot.slane %v396, 2
      %v404 = vsel %vm370, %v401, %v403
      %v407 = vadd.f32 %v388, %v402
      %v408 = vadd.f32 %v389, %v404
      %409 = vrot.lane.b32.xlu0 %v373, 120
      %v410 = vpop.permute.xlu0 %409
      %411 = vrot.lane.b32.xlu0 %v375, 120
      %v412 = vpop.permute.xlu0 %411
      %v413 = vlaneseq
      %v414 = vshrl.u32 %v413, 7
      %v415 = vsub.s32 0, %v414
      %v416 = vrot.slane %v283, %v415
      %v417 = vmul.f32 %v410, %v416
      %v418 = vmul.f32 %v412, %v416
      %v419 = vadd.f32 %v407, %v417
      %v420 = vadd.f32 %v408, %v418
      %v421 = vld [vmem:[%s2] sm:$0xff]
      %v422 = vld [vmem:[%s2 + $0x8] sm:$0xff]
      %v423 = vld [vmem:[%s2 + $0x10] sm:$0xff]
      %v424 = vld [vmem:[%s2 + $0x18] sm:$0xff]
      %v425 = vld [vmem:[%s2 + $0x20] sm:$0xff]
      %v426 = vld [vmem:[%s2 + $0x28] sm:$0xff]
      %v427 = vld [vmem:[%s2 + $0x30] sm:$0xff]
      %v428 = vld [vmem:[%s2 + $0x38] sm:$0xff]
      %v429 = vld [vmem:[%s2 + $0x40] sm:$0xff]
      %v430 = vld [vmem:[%s2 + $0x48] sm:$0xff]
      %v431 = vld [vmem:[%s2 + $0x50] sm:$0xff]
      %v432 = vld [vmem:[%s2 + $0x58] sm:$0xff]
      %v433 = vld [vmem:[%s2 + $0x60] sm:$0xff]
      %v434 = vld [vmem:[%s2 + $0x68] sm:$0xff]
      %v435 = vld [vmem:[%s2 + $0x70] sm:$0xff]
      %v436 = vld [vmem:[%s2 + $0x78] sm:$0xff]
      %v437 = vld [vmem:[%s3] sm:$0x1]
      %v439 = vlaneseq
      %v440 = vshrl.u32 %v439, 7
      %v441 = vsub.s32 0, %v440
      %v442 = vrot.slane %v437, %v441
      %444 = vmatprep.subr.mxu0 0.0
      %445 = vmatpush1.msra.mxu0 %v421
      %446 = vmatprep.subr.mxu0 0.0
      %447 = vmatpush1.msra.mxu0 %v422
      %448 = vmatprep.subr.mxu0 0.0
      %449 = vmatpush1.msra.mxu0 %v423
      %450 = vmatprep.subr.mxu0 0.0
      %451 = vmatpush1.msra.mxu0 %v424
      %452 = vmatprep.subr.mxu0 0.0
      %453 = vmatpush1.msra.mxu0 %v425
      %454 = vmatprep.subr.mxu0 0.0
      %455 = vmatpush1.msra.mxu0 %v426
      %456 = vmatprep.subr.mxu0 0.0
      %457 = vmatpush1.msra.mxu0 %v427
      %458 = vmatprep.subr.mxu0 0.0
      %459 = vmatpush1.msra.mxu0 %v428
      %460 = vmatprep.subr.mxu0 0.0
      %461 = vmatpush1.msra.mxu0 %v429
      %462 = vmatprep.subr.mxu0 0.0
      %463 = vmatpush1.msra.mxu0 %v430
      %464 = vmatprep.subr.mxu0 0.0
      %465 = vmatpush1.msra.mxu0 %v431
      %466 = vmatprep.subr.mxu0 0.0
      %467 = vmatpush1.msra.mxu0 %v432
      %468 = vmatprep.subr.mxu0 0.0
      %469 = vmatpush1.msra.mxu0 %v433
      %470 = vmatprep.subr.mxu0 0.0
      %471 = vmatpush1.msra.mxu0 %v434
      %472 = vmatprep.subr.mxu0 0.0
      %473 = vmatpush1.msra.mxu0 %v435
      %474 = vmatprep.subr.mxu0 0.0
      %475 = vmatpush1.msra.mxu0 %v436
      %476 = vmatprep.subr.mxu0 0.0
      %477 = vmatpush1.msra.mxu0 0.0
      %478 = vmatprep.subr.mxu0 0.0
      %479 = vmatpush1.msra.mxu0 0.0
      %480 = vmatprep.subr.mxu0 0.0
      %481 = vmatpush1.msra.mxu0 0.0
      %482 = vmatprep.subr.mxu0 0.0
      %483 = vmatpush1.msra.mxu0 0.0
      %484 = vmatprep.subr.mxu0 0.0
      %485 = vmatpush1.msra.mxu0 0.0
      %486 = vmatprep.subr.mxu0 0.0
      %487 = vmatpush1.msra.mxu0 0.0
      %488 = vmatprep.subr.mxu0 0.0
      %489 = vmatpush1.msra.mxu0 0.0
      %490 = vmatprep.subr.mxu0 0.0
      %491 = vmatpush1.msra.mxu0 0.0
      %492 = vmatprep.subr.mxu0 0.0
      %493 = vmatpush1.msra.mxu0 0.0
      %494 = vmatprep.subr.mxu0 0.0
      %495 = vmatpush1.msra.mxu0 0.0
      %496 = vmatprep.subr.mxu0 0.0
      %497 = vmatpush1.msra.mxu0 0.0
      %498 = vmatprep.subr.mxu0 0.0
      %499 = vmatpush1.msra.mxu0 0.0
      %500 = vmatprep.subr.mxu0 0.0
      %501 = vmatpush1.msra.mxu0 0.0
      %502 = vmatprep.subr.mxu0 0.0
      %503 = vmatpush1.msra.mxu0 0.0
      %504 = vmatprep.subr.mxu0 0.0
      %505 = vmatpush1.msra.mxu0 0.0
      %506 = vmatprep.subr.mxu0 0.0
      %507 = vmatpush1.msra.mxu0 0.0
      %508 = vmatprep.mubr.f32.mxu0 0.0
      %509 = vmatmul.mubr.f32.gmra.mrb[0].mxu0 %v419
      %v510 = vpop.f32.mrb[0].mxu0
      %v511 = vadd.f32 %v442, %v510
      %v512 = vpop.f32.mrb[0].mxu0
      %513 = vmatprep.mubr.f32.mxu0 0.0
      %514 = vmatmul.mubr.f32.gmra.mrb[0].mxu0 %v420
      %v515 = vpop.f32.mrb[0].mxu0
      %v516 = vadd.f32 %v442, %v515
      %v517 = vpop.f32.mrb[0].mxu0
      %518 = vdwg.mxu0
      %v519 = vmax.f32 %v511, 0.0
      %v520 = vmax.f32 %v516, 0.0
      %521 = vst [vmem:[#allocation2] sm:$0xff] 0.0
      %522 = vst [vmem:[#allocation2 + $0x8] sm:$0xff] 0.0
      %523 = vst [vmem:[#allocation2 + $0x10] sm:$0x3] 0.0
      %524 = vst [vmem:[#allocation2 + $0x1] sm:$0xff] %v519
      %525 = vst [vmem:[#allocation2 + $0x9] sm:$0xff] %v520
      %v526 = vld [vmem:[#allocation2] sm:$0xff]
      %v527 = vld [vmem:[#allocation2 + $0x8] sm:$0xff]
      %v528 = vld [vmem:[#allocation2 + $0x10] sm:$0x3]
      %v529 = vld [vmem:[%s4] sm:$0xff]
      %v530 = vld [vmem:[%s4 + $0x8] sm:$0x1]
      %531 = vrot.lane.b32.xlu0 %v526, 8
      %v532 = vpop.permute.xlu0 %531
      %533 = vrot.lane.b32.xlu0 %v527, 8
      %v534 = vpop.permute.xlu0 %533
      %v535 = vlaneseq
      %v536 = vshrl.u32 %v535, 7
      %v537 = vsub.s32 0, %v536
      %v538 = vrot.slane %v529, %v537
      %v539 = vmul.f32 %v532, %v538
      %v540 = vmul.f32 %v534, %v538
      %v541 = vadd.f32 %v539, 0.0
      %v542 = vadd.f32 %v540, 0.0
      %v543 = vlaneseq
      %v544 = vshrl.u32 %v543, 7
      %v545 = vsub.s32 1, %v544
      %v546 = vrot.slane %v529, %v545
      %v547 = vmul.f32 %v526, %v546
      %v548 = vmul.f32 %v527, %v546
      %v549 = vadd.f32 %v541, %v547
      %v550 = vadd.f32 %v542, %v548
      %551 = vrot.lane.b32.xlu0 %v526, 120
      %v552 = vpop.permute.xlu0 %551
      %553 = vrot.lane.b32.xlu0 %v527, 120
      %v554 = vpop.permute.xlu0 %553
      %v555 = vlaneseq
      %v556 = vshrl.u32 %v555, 7
      %v557 = vsub.s32 2, %v556
      %v558 = vrot.slane %v529, %v557
      %v559 = vmul.f32 %v552, %v558
      %v560 = vmul.f32 %v554, %v558
      %v561 = vadd.f32 %v549, %v559
      %v562 = vadd.f32 %v550, %v560
      %v566 = vrot.slane %v526, 1
      %v567 = vrot.slane %v527, 1
      %v568 = vsel %vm319, %v566, %v567
      %v569 = vrot.slane %v528, 1
      %v570 = vsel %vm319, %v567, %v569
      %573 = vrot.lane.b32.xlu0 %v568, 8
      %v574 = vpop.permute.xlu0 %573
      %575 = vrot.lane.b32.xlu0 %v570, 8
      %v576 = vpop.permute.xlu0 %575
      %v577 = vlaneseq
      %v578 = vshrl.u32 %v577, 7
      %v579 = vsub.s32 3, %v578
      %v580 = vrot.slane %v529, %v579
      %v581 = vmul.f32 %v574, %v580
      %v582 = vmul.f32 %v576, %v580
      %v583 = vadd.f32 %v561, %v581
      %v584 = vadd.f32 %v562, %v582
      %v585 = vlaneseq
      %v586 = vshrl.u32 %v585, 7
      %v587 = vsub.s32 4, %v586
      %v588 = vrot.slane %v529, %v587
      %v589 = vmul.f32 %v526, %v588
      %v590 = vmul.f32 %v527, %v588
      %v591 = vmul.f32 %v528, %v588
      %v595 = vrot.slane %v589, 1
      %v596 = vrot.slane %v590, 1
      %v597 = vsel %vm319, %v595, %v596
      %v598 = vrot.slane %v591, 1
      %v599 = vsel %vm319, %v596, %v598
      %v602 = vadd.f32 %v583, %v597
      %v603 = vadd.f32 %v584, %v599
      %604 = vrot.lane.b32.xlu0 %v568, 120
      %v605 = vpop.permute.xlu0 %604
      %606 = vrot.lane.b32.xlu0 %v570, 120
      %v607 = vpop.permute.xlu0 %606
      %v608 = vlaneseq
      %v609 = vshrl.u32 %v608, 7
      %v610 = vsub.s32 5, %v609
      %v611 = vrot.slane %v529, %v610
      %v612 = vmul.f32 %v605, %v611
      %v613 = vmul.f32 %v607, %v611
      %v614 = vadd.f32 %v602, %v612
      %v615 = vadd.f32 %v603, %v613
      %v616 = vrot.slane %v526, 2
      %v617 = vrot.slane %v527, 2
      %v618 = vsel %vm370, %v616, %v617
      %v619 = vrot.slane %v528, 2
      %v620 = vsel %vm370, %v617, %v619
      %623 = vrot.lane.b32.xlu0 %v618, 8
      %v624 = vpop.permute.xlu0 %623
      %625 = vrot.lane.b32.xlu0 %v620, 8
      %v626 = vpop.permute.xlu0 %625
      %v627 = vlaneseq
      %v628 = vshrl.u32 %v627, 7
      %v629 = vsub.s32 6, %v628
      %v630 = vrot.slane %v529, %v629
      %v631 = vmul.f32 %v624, %v630
      %v632 = vmul.f32 %v626, %v630
      %v633 = vadd.f32 %v614, %v631
      %v634 = vadd.f32 %v615, %v632
      %v635 = vlaneseq
      %v636 = vshrl.u32 %v635, 7
      %v637 = vsub.s32 7, %v636
      %v638 = vrot.slane %v529, %v637
      %v639 = vmul.f32 %v526, %v638
      %v640 = vmul.f32 %v527, %v638
      %v641 = vmul.f32 %v528, %v638
      %v645 = vrot.slane %v639, 2
      %v646 = vrot.slane %v640, 2
      %v647 = vsel %vm370, %v645, %v646
      %v648 = vrot.slane %v641, 2
      %v649 = vsel %vm370, %v646, %v648
      %v652 = vadd.f32 %v633, %v647
      %v653 = vadd.f32 %v634, %v649
      %654 = vrot.lane.b32.xlu0 %v618, 120
      %v655 = vpop.permute.xlu0 %654
      %656 = vrot.lane.b32.xlu0 %v620, 120
      %v657 = vpop.permute.xlu0 %656
      %v658 = vlaneseq
      %v659 = vshrl.u32 %v658, 7
      %v660 = vsub.s32 0, %v659
      %v661 = vrot.slane %v530, %v660
      %v662 = vmul.f32 %v655, %v661
      %v663 = vmul.f32 %v657, %v661
      %v664 = vadd.f32 %v652, %v662
      %v665 = vadd.f32 %v653, %v663
      %v666 = vld [vmem:[%s5] sm:$0xff]
      %v667 = vld [vmem:[%s5 + $0x8] sm:$0xff]
      %v668 = vld [vmem:[%s5 + $0x10] sm:$0xff]
      %v669 = vld [vmem:[%s5 + $0x18] sm:$0xff]
      %v670 = vld [vmem:[%s5 + $0x20] sm:$0xff]
      %v671 = vld [vmem:[%s5 + $0x28] sm:$0xff]
      %v672 = vld [vmem:[%s5 + $0x30] sm:$0xff]
      %v673 = vld [vmem:[%s5 + $0x38] sm:$0xff]
      %v674 = vld [vmem:[%s5 + $0x40] sm:$0xff]
      %v675 = vld [vmem:[%s5 + $0x48] sm:$0xff]
      %v676 = vld [vmem:[%s5 + $0x50] sm:$0xff]
      %v677 = vld [vmem:[%s5 + $0x58] sm:$0xff]
      %v678 = vld [vmem:[%s5 + $0x60] sm:$0xff]
      %v679 = vld [vmem:[%s5 + $0x68] sm:$0xff]
      %v680 = vld [vmem:[%s5 + $0x70] sm:$0xff]
      %v681 = vld [vmem:[%s5 + $0x78] sm:$0xff]
      %v682 = vld [vmem:[%s6] sm:$0x1]
      %v684 = vlaneseq
      %v685 = vshrl.u32 %v684, 7
      %v686 = vsub.s32 0, %v685
      %v687 = vrot.slane %v682, %v686
      %689 = vmatprep.subr.mxu0 0.0
      %690 = vmatpush1.msra.mxu0 %v666
      %691 = vmatprep.subr.mxu0 0.0
      %692 = vmatpush1.msra.mxu0 %v667
      %693 = vmatprep.subr.mxu0 0.0
      %694 = vmatpush1.msra.mxu0 %v668
      %695 = vmatprep.subr.mxu0 0.0
      %696 = vmatpush1.msra.mxu0 %v669
      %697 = vmatprep.subr.mxu0 0.0
      %698 = vmatpush1.msra.mxu0 %v670
      %699 = vmatprep.subr.mxu0 0.0
      %700 = vmatpush1.msra.mxu0 %v671
      %701 = vmatprep.subr.mxu0 0.0
      %702 = vmatpush1.msra.mxu0 %v672
      %703 = vmatprep.subr.mxu0 0.0
      %704 = vmatpush1.msra.mxu0 %v673
      %705 = vmatprep.subr.mxu0 0.0
      %706 = vmatpush1.msra.mxu0 %v674
      %707 = vmatprep.subr.mxu0 0.0
      %708 = vmatpush1.msra.mxu0 %v675
      %709 = vmatprep.subr.mxu0 0.0
      %710 = vmatpush1.msra.mxu0 %v676
      %711 = vmatprep.subr.mxu0 0.0
      %712 = vmatpush1.msra.mxu0 %v677
      %713 = vmatprep.subr.mxu0 0.0
      %714 = vmatpush1.msra.mxu0 %v678
      %715 = vmatprep.subr.mxu0 0.0
      %716 = vmatpush1.msra.mxu0 %v679
      %717 = vmatprep.subr.mxu0 0.0
      %718 = vmatpush1.msra.mxu0 %v680
      %719 = vmatprep.subr.mxu0 0.0
      %720 = vmatpush1.msra.mxu0 %v681
      %721 = vmatprep.subr.mxu0 0.0
      %722 = vmatpush1.msra.mxu0 0.0
      %723 = vmatprep.subr.mxu0 0.0
      %724 = vmatpush1.msra.mxu0 0.0
      %725 = vmatprep.subr.mxu0 0.0
      %726 = vmatpush1.msra.mxu0 0.0
      %727 = vmatprep.subr.mxu0 0.0
      %728 = vmatpush1.msra.mxu0 0.0
      %729 = vmatprep.subr.mxu0 0.0
      %730 = vmatpush1.msra.mxu0 0.0
      %731 = vmatprep.subr.mxu0 0.0
      %732 = vmatpush1.msra.mxu0 0.0
      %733 = vmatprep.subr.mxu0 0.0
      %734 = vmatpush1.msra.mxu0 0.0
      %735 = vmatprep.subr.mxu0 0.0
      %736 = vmatpush1.msra.mxu0 0.0
      %737 = vmatprep.subr.mxu0 0.0
      %738 = vmatpush1.msra.mxu0 0.0
      %739 = vmatprep.subr.mxu0 0.0
      %740 = vmatpush1.msra.mxu0 0.0
      %741 = vmatprep.subr.mxu0 0.0
      %742 = vmatpush1.msra.mxu0 0.0
      %743 = vmatprep.subr.mxu0 0.0
      %744 = vmatpush1.msra.mxu0 0.0
      %745 = vmatprep.subr.mxu0 0.0
      %746 = vmatpush1.msra.mxu0 0.0
      %747 = vmatprep.subr.mxu0 0.0
      %748 = vmatpush1.msra.mxu0 0.0
      %749 = vmatprep.subr.mxu0 0.0
      %750 = vmatpush1.msra.mxu0 0.0
      %751 = vmatprep.subr.mxu0 0.0
      %752 = vmatpush1.msra.mxu0 0.0
      %753 = vmatprep.mubr.f32.mxu0 0.0
      %754 = vmatmul.mubr.f32.gmra.mrb[0].mxu0 %v664
      %v755 = vpop.f32.mrb[0].mxu0
      %v756 = vadd.f32 %v687, %v755
      %v757 = vpop.f32.mrb[0].mxu0
      %758 = vmatprep.mubr.f32.mxu0 0.0
      %759 = vmatmul.mubr.f32.gmra.mrb[0].mxu0 %v665
      %v760 = vpop.f32.mrb[0].mxu0
      %v761 = vadd.f32 %v687, %v760
      %v762 = vpop.f32.mrb[0].mxu0
      %763 = vdwg.mxu0
      %v764 = vmax.f32 %v756, 0.0
      %v765 = vmax.f32 %v761, 0.0
      %766 = vst [vmem:[%s278] sm:$0xff] %v764
      %767 = vst [vmem:[%s278 + $0x8] sm:$0xff] %v765
      %p768 = scmp.lt.s32.totalorder %s18, 1
      %s769 = scalar_select %p768, %s18, 1
      %s770 = smul.addr %s769, 2
      %s771 = smul.addr %s770, 8
      %s772 = scalar_lea.vmem %s7, %s771
      // Predicated region
      $region49: #{up_forward.1} parent=47 // pred_check
        %p773 = pneg %p188
      $region50: #{up_forward.1} parent=47 // pred_check_branch
        %775 = sbr.rel (%p773) target = $region52
      $region51: #{up_forward.1} parent=47 // pred_region
        _
      $region52: #{up_forward.1} parent=47 // pred_fallthru
        _
    $region48: #{up_forward.1} parent=5 // pred_fallthru
      _
    %p776 = scmp.le.s32.totalorder 2, %s13
    // Predicated region
    $region53: #{up_forward.1} parent=5 // pred_check
      %p777 = pneg %p776
    $region54: #{up_forward.1} parent=5 // pred_check_branch
      %779 = sbr.rel (%p777) target = $region56
    $region55: #{up_forward.1} parent=5 // pred_region
      %s780 = ssub.s32 %s13, 2
      // Predicated region
      $region57: #{up_forward.1} parent=55 // pred_check
        %p781 = pneg %p194
      $region58: #{up_forward.1} parent=55 // pred_check_branch
        %783 = sbr.rel (%p781) target = $region60
      $region59: #{up_forward.1} parent=55 // pred_region
        %p784 = scmp.lt.s32.totalorder %s19, 1
        %s785 = scalar_select %p784, %s19, 1
        %s786 = smul.addr %s785, 2
        %s787 = smul.addr %s786, 8
        %s788 = scalar_lea.vmem %s7, %s787
      $region60: #{up_forward.1} parent=55 // pred_fallthru
        _
    $region56: #{up_forward.1} parent=5 // pred_fallthru
      _
  $region6: #{up_forward.1} parent=0 // loop_footer
    %s17 = sadd.s32 1, %s13
  $region7: #{up_forward.1} parent=0 // loop_footer_branch
    %12 = sbr.rel target = $region3
  $region8: #{up_forward.1} parent=0 // loop_exit
    _

</llo_original>
